<compile_context>
chip_gen: v7x
topology: tpu7x:2x2x1
jax: 0.10.0
libtpu: 0.0.40
codegen_flags: <defaults>
</compile_context>

<pallas_src>
import functools
import math

import jax
import jax.numpy as jnp
from jax import lax
from jax.experimental import pallas as pl
from jax.experimental.pallas import tpu as pltpu

_LANES = 128
# Target HBM bytes per INPUT block (two inputs => ~2x this per grid step).
_TARGET_BLOCK_BYTES = 6 * 1024 * 1024
_MIN_VMEM_LIMIT_BYTES = 24 * 1024 * 1024
_MAX_VMEM_LIMIT_BYTES = 48 * 1024 * 1024


def _min_sublane_tile(itemsize):
    # Packed sublane tile: f32 -> 8, bf16/f16 -> 16, int8/fp8 -> 32.
    return max(8, 32 // int(itemsize))


def _choose_tiling(R, C, itemsize):
    """Pick (rows_tile, gsub) for the (C, rows_tile, 128) input blocks.

    rows_tile is sized by BYTES (so each grid step moves multi-MiB from HBM)
    and kept a multiple of the packed sublane tile, so the VMEM footprint
    estimate is exact (no hidden sublane padding).
    """
    gsub = min(_min_sublane_tile(itemsize), R)
    bytes_per_row = C * _LANES * itemsize
    max_rows = max(gsub,
                   (_TARGET_BLOCK_BYTES // bytes_per_row) // gsub * gsub)
    if R <= max_rows:
        return R, gsub          # single row-block (full-dim block is legal)
    return max_rows, gsub       # multiple of gsub (and hence of 8)


def _dice_partial_kernel(x_ref, t_ref, num_ref, den_ref, *,
                         n_groups, n_groups_last, rows_last,
                         need_mask, grid_j, unroll):
    """Accumulate per-channel partial sums for one (n, row-tile) block.

    x_ref / t_ref : (C, rows_tile, 128) input tiles (native dtype).
    num_ref       : (C, gsub, 128) resident accumulator, sum(x * t).
    den_ref       : (C, gsub, 128) resident accumulator, sum(x*x + t*t).
    """
    j = pl.program_id(1)

    @pl.when(j == 0)
    def _():
        num_ref[...] = jnp.zeros_like(num_ref)
        den_ref[...] = jnp.zeros_like(den_ref)

    acc_shape = num_ref.shape          # (C, gsub, 128)
    gsub = acc_shape[1]

    def run(groups, masked):
        if masked:
            # Hoisted once per step; per group we only pay a scalar subtract,
            # one vector compare and two selects.
            row_iota = lax.broadcasted_iota(jnp.int32, acc_shape, 1)

        def body(g, carry):
            num, den = carry
            start = pl.multiple_of(g * gsub, gsub)
            xs = x_ref[:, pl.ds(start, gsub), :].astype(jnp.float32)
            ts = t_ref[:, pl.ds(start, gsub), :].astype(jnp.float32)
            if masked:
                keep = row_iota < (rows_last - start)
                xs = jnp.where(keep, xs, 0.0)
                ts = jnp.where(keep, ts, 0.0)
            num = num + xs * ts
            den = den + xs * xs + ts * ts
            return num, den

        init = (jnp.zeros(acc_shape, jnp.float32),
                jnp.zeros(acc_shape, jnp.float32))
        num, den = lax.fori_loop(0, groups, body, init,
                                 unroll=max(1, min(unroll, groups)))
        # Single read-modify-write of the resident output block per grid step.
        num_ref[...] += num
        den_ref[...] += den

    if grid_j == 1:
        run(n_groups_last, need_mask)
    elif n_groups_last == n_groups and not need_mask:
        run(n_groups, False)
    else:
        # Ragged specialization: the mask (and the shorter group loop) only
        # runs on the last row-tile; the hot path stays mask-free.
        last = grid_j - 1

        @pl.when(j < last)
        def _():
            run(n_groups, False)

        @pl.when(j == last)
        def _():
            run(n_groups_last, need_mask)


def _dice_sums(x4, t4):
    """Per-channel sums of x*t and x*x + t*t over (N, C, R, 128) inputs."""
    N, C, R, L = x4.shape
    itemsize = jnp.dtype(x4.dtype).itemsize

    rows_tile, gsub = _choose_tiling(R, C, itemsize)
    grid_j = pl.cdiv(R, rows_tile)
    rows_last = R - (grid_j - 1) * rows_tile
    n_groups = pl.cdiv(rows_tile, gsub)
    n_groups_last = pl.cdiv(rows_last, gsub)
    need_mask = (rows_last % gsub) != 0

    # Explicit scoped-VMEM limit from the actual double-buffered footprint
    # (2 inputs + 2 outputs, 2 buffers each) plus slack; legal on v5e/v6e/v7x.
    block_in = C * rows_tile * L * itemsize
    block_out = C * gsub * L * 4
    vmem_limit = int(min(max(4 * block_in + 4 * block_out + (8 << 20),
                             _MIN_VMEM_LIMIT_BYTES),
                         _MAX_VMEM_LIMIT_BYTES))

    kernel = functools.partial(
        _dice_partial_kernel,
        n_groups=n_groups, n_groups_last=n_groups_last, rows_last=rows_last,
        need_mask=need_mask, grid_j=grid_j, unroll=8)

    def in_spec():
        return pl.BlockSpec((pl.Squeezed(), C, rows_tile, L),
                            lambda n, j: (n, 0, j, 0))

    def out_spec():
        return pl.BlockSpec((pl.Squeezed(), C, gsub, L),
                            lambda n, j: (n, 0, 0, 0))

    # TODO(synk): on v7x with N == 1, add a second "parallel" grid axis that
    # splits the row range across the two TensorCores (each split writing its
    # own partial slab); single-TC v5e/v6e gain nothing from it.
    num_p, den_p = pl.pallas_call(
        kernel,
        out_shape=(jax.ShapeDtypeStruct((N, C, gsub, L), jnp.float32),
                   jax.ShapeDtypeStruct((N, C, gsub, L), jnp.float32)),
        grid_spec=pltpu.PrefetchScalarGridSpec(
            num_scalar_prefetch=0,
            grid=(N, grid_j),
            in_specs=[in_spec(), in_spec()],
            out_specs=[out_spec(), out_spec()],
        ),
        # Default Buffered(2) input pipelining on purpose: the kernel is
        # HBM-bandwidth bound; deeper buffering only multiplies VMEM usage.
        compiler_params=pltpu.CompilerParams(
            dimension_semantics=("parallel", "arbitrary"),
            vmem_limit_bytes=vmem_limit),
    )(x4, t4)

    # Tiny (N, C, gsub, 128) partials: reduce in plain JAX.
    num = jnp.sum(num_p, axis=(0, 2, 3))
    den = jnp.sum(den_p, axis=(0, 2, 3))
    return num, den


def dice_loss(input_, target, *, channelwise=True, eps=1e-07):
    """Dice loss (invert=True), matching the PyTorch DiceLoss.forward."""
    if input_.shape != target.shape:
        raise ValueError(
            f"Expect Dice input and target of same shape, got: "
            f"{input_.shape}, {target.shape}.")
    if input_.ndim < 2:
        raise ValueError("Dice input must be at least 2D (N, C, ...).")

    N, C = int(input_.shape[0]), int(input_.shape[1])
    S = int(math.prod(input_.shape[2:])) if input_.ndim > 2 else 1

    # Free, contiguous reshapes (no transpose, no pad).
    x = input_.reshape(N, C, S)
    t = target.reshape(N, C, S)

    R = S // _LANES
    S_main = R * _LANES

    num = jnp.zeros((C,), jnp.float32)
    den = jnp.zeros((C,), jnp.float32)

    if R > 0:
        if S_main == S:
            x4 = x.reshape(N, C, R, _LANES)   # free, contiguous
            t4 = t.reshape(N, C, R, _LANES)
        else:
            # NOTE: when S is not a multiple of 128 this slice materializes one
            # extra copy of the bulk data; typical segmentation shapes
            # (H*W a multiple of 128) take the free-reshape path above.
            x4 = x[:, :, :S_main].reshape(N, C, R, _LANES)
            t4 = t[:, :, :S_main].reshape(N, C, R, _LANES)
        num_k, den_k = _dice_sums(x4, t4)
        num = num + num_k
        den = den + den_k

    if S_main < S:
        # Sub-128 spatial tail: at most 127 elements per (n, c) -> plain JAX.
        xt = x[:, :, S_main:].astype(jnp.float32)
        tt = t[:, :, S_main:].astype(jnp.float32)
        num = num + jnp.sum(xt * tt, axis=(0, 2))
        den = den + jnp.sum(xt * xt + tt * tt, axis=(0, 2))

    if channelwise:
        score = 2.0 * (num / jnp.maximum(den, eps))      # (C,)
        return jnp.sum(1.0 - score)                       # invert + sum
    else:
        num_tot = jnp.sum(num)
        den_tot = jnp.sum(den)
        return 1.0 - 2.0 * (num_tot / jnp.maximum(den_tot, eps))


def dice_loss_ref(input_, target, *, channelwise=True, eps=1e-07):
    """Pure-JAX reference mirroring the PyTorch implementation."""
    if channelwise:
        ndim = input_.ndim
        perm = list(range(ndim))
        perm[0], perm[1] = perm[1], perm[0]
        C = input_.shape[1]
        x = jnp.transpose(input_, perm).reshape(C, -1)
        t = jnp.transpose(target, perm).reshape(C, -1)
        num = jnp.sum(x * t, axis=-1)
        den = jnp.sum(x * x, axis=-1) + jnp.sum(t * t, axis=-1)
        score = 2.0 * (num / jnp.maximum(den, eps))
        return jnp.sum(1.0 - score)
    else:
        num = jnp.sum(input_ * target)
        den = jnp.sum(input_ * input_) + jnp.sum(target * target)
        return 1.0 - 2.0 * (num / jnp.maximum(den, eps))


if __name__ == "__main__":
    key = jax.random.PRNGKey(0)
    k1, k2 = jax.random.split(key)
    # Small shapes consistent with the module's (N, C, H, W) convention.
    N, C, H, W = 2, 4, 16, 16
    input_ = jax.nn.sigmoid(jax.random.normal(k1, (N, C, H, W), jnp.float32))
    target = (jax.random.uniform(k2, (N, C, H, W)) > 0.5).astype(jnp.float32)

    loss = dice_loss(input_, target)
    loss = jax.block_until_ready(loss)

    ref = dice_loss_ref(input_, target)
    assert jnp.allclose(loss, ref, rtol=1e-5, atol=1e-5), (loss, ref)

    # Also exercise the non-channelwise branch once.
    loss_nc = jax.block_until_ready(dice_loss(input_, target, channelwise=False))
    ref_nc = dice_loss_ref(input_, target, channelwise=False)
    assert jnp.allclose(loss_nc, ref_nc, rtol=1e-5, atol=1e-5), (loss_nc, ref_nc)

    print("KERNEL_OK")
</pallas_src>

<mosaic_0001>
module attributes {stable_mosaic.version = 11 : i64} {
  func.func @_dice_partial_kernel(%arg0: i32, %arg1: i32, %arg2: memref<1x4x2x128xf32, #tpu.memory_space<vmem>>, %arg3: memref<1x4x2x128xf32, #tpu.memory_space<vmem>>, %arg4: memref<1x4x2x128xf32, #tpu.memory_space<vmem>>, %arg5: memref<1x4x2x128xf32, #tpu.memory_space<vmem>>) attributes {dimension_semantics = [#tpu.dimension_semantics<parallel>, #tpu.dimension_semantics<arbitrary>], iteration_bounds = array<i64: 2, 1>, scalar_prefetch = 0 : i64, scratch_operands = 0 : i64, tpu.core_type = #tpu.core_type<tc>, window_params = [{transform_indices = @transform_0, window_bounds = array<i64: 1, 4, 2, 128>}, {transform_indices = @transform_1, window_bounds = array<i64: 1, 4, 2, 128>}, {transform_indices = @transform_2, window_bounds = array<i64: 1, 4, 2, 128>}, {transform_indices = @transform_3, window_bounds = array<i64: 1, 4, 2, 128>}]} {
    %c0_i32 = arith.constant 0 : i32
    %0 = arith.cmpi eq, %arg1, %c0_i32 : i32
    %1 = arith.extui %0 : i1 to i32
    %c0_i32_0 = arith.constant 0 : i32
    %2 = arith.cmpi ne, %1, %c0_i32_0 : i32
    scf.if %2 {
      %cst_24 = arith.constant 0.000000e+00 : f32
      %31 = vector.broadcast %cst_24 : f32 to vector<4x2x128xf32>
      %c0_25 = arith.constant 0 : index
      %c0_26 = arith.constant 0 : index
      %c0_27 = arith.constant 0 : index
      %c0_28 = arith.constant 0 : index
      %32 = vector.load %arg4[%c0_25, %c0_26, %c0_27, %c0_28] : memref<1x4x2x128xf32, #tpu.memory_space<vmem>>, vector<1x4x2x128xf32>
      %33 = vector.shape_cast %32 : vector<1x4x2x128xf32> to vector<4x2x128xf32>
      %34 = vector.shape_cast %31 : vector<4x2x128xf32> to vector<1x4x2x128xf32>
      tpu.vector_store %arg4[%c0_25, %c0_26, %c0_27, %c0_28], %34 {strides = array<i32>} : memref<1x4x2x128xf32, #tpu.memory_space<vmem>>, vector<1x4x2x128xf32>,
      %cst_29 = arith.constant 0.000000e+00 : f32
      %35 = vector.broadcast %cst_29 : f32 to vector<4x2x128xf32>
      %c0_30 = arith.constant 0 : index
      %c0_31 = arith.constant 0 : index
      %c0_32 = arith.constant 0 : index
      %c0_33 = arith.constant 0 : index
      %36 = vector.load %arg5[%c0_30, %c0_31, %c0_32, %c0_33] : memref<1x4x2x128xf32, #tpu.memory_space<vmem>>, vector<1x4x2x128xf32>
      %37 = vector.shape_cast %36 : vector<1x4x2x128xf32> to vector<4x2x128xf32>
      %38 = vector.shape_cast %35 : vector<4x2x128xf32> to vector<1x4x2x128xf32>
      tpu.vector_store %arg5[%c0_30, %c0_31, %c0_32, %c0_33], %38 {strides = array<i32>} : memref<1x4x2x128xf32, #tpu.memory_space<vmem>>, vector<1x4x2x128xf32>,
    } else {
    }
    %cst = arith.constant 0.000000e+00 : f32
    %3 = vector.broadcast %cst : f32 to vector<4x2x128xf32>
    %cst_1 = arith.constant 0.000000e+00 : f32
    %4 = vector.broadcast %cst_1 : f32 to vector<4x2x128xf32>
    %c0_i32_2 = arith.constant 0 : i32
    %c2_i32 = arith.constant 2 : i32
    %5 = arith.muli %c0_i32_2, %c2_i32 : i32
    %6 = tpu.assume_multiple %5, 2 : i32
    %c0 = arith.constant 0 : index
    %c0_3 = arith.constant 0 : index
    %7 = arith.index_cast %6 : i32 to index
    %c0_4 = arith.constant 0 : index
    %8 = vector.load %arg2[%c0, %c0_3, %7, %c0_4] : memref<1x4x2x128xf32, #tpu.memory_space<vmem>>, vector<1x4x2x128xf32>
    %9 = vector.shape_cast %8 : vector<1x4x2x128xf32> to vector<4x2x128xf32>
    %c0_5 = arith.constant 0 : index
    %c0_6 = arith.constant 0 : index
    %10 = arith.index_cast %6 : i32 to index
    %c0_7 = arith.constant 0 : index
    %11 = vector.load %arg3[%c0_5, %c0_6, %10, %c0_7] : memref<1x4x2x128xf32, #tpu.memory_space<vmem>>, vector<1x4x2x128xf32>
    %12 = vector.shape_cast %11 : vector<1x4x2x128xf32> to vector<4x2x128xf32>
    %13 = arith.mulf %9, %12 : vector<4x2x128xf32>
    %14 = arith.addf %3, %13 : vector<4x2x128xf32>
    %15 = arith.mulf %9, %9 : vector<4x2x128xf32>
    %16 = arith.addf %4, %15 : vector<4x2x128xf32>
    %17 = arith.mulf %12, %12 : vector<4x2x128xf32>
    %18 = arith.addf %16, %17 : vector<4x2x128xf32>
    %c1_i32 = arith.constant 1 : i32
    %c0_8 = arith.constant 0 : index
    %c0_9 = arith.constant 0 : index
    %c0_10 = arith.constant 0 : index
    %c0_11 = arith.constant 0 : index
    %19 = vector.load %arg4[%c0_8, %c0_9, %c0_10, %c0_11] : memref<1x4x2x128xf32, #tpu.memory_space<vmem>>, vector<1x4x2x128xf32>
    %20 = vector.shape_cast %19 : vector<1x4x2x128xf32> to vector<4x2x128xf32>
    %21 = arith.addf %20, %14 : vector<4x2x128xf32>
    %c0_12 = arith.constant 0 : index
    %c0_13 = arith.constant 0 : index
    %c0_14 = arith.constant 0 : index
    %c0_15 = arith.constant 0 : index
    %22 = vector.load %arg4[%c0_12, %c0_13, %c0_14, %c0_15] : memref<1x4x2x128xf32, #tpu.memory_space<vmem>>, vector<1x4x2x128xf32>
    %23 = vector.shape_cast %22 : vector<1x4x2x128xf32> to vector<4x2x128xf32>
    %24 = vector.shape_cast %21 : vector<4x2x128xf32> to vector<1x4x2x128xf32>
    tpu.vector_store %arg4[%c0_12, %c0_13, %c0_14, %c0_15], %24 {strides = array<i32>} : memref<1x4x2x128xf32, #tpu.memory_space<vmem>>, vector<1x4x2x128xf32>,
    %c0_16 = arith.constant 0 : index
    %c0_17 = arith.constant 0 : index
    %c0_18 = arith.constant 0 : index
    %c0_19 = arith.constant 0 : index
    %25 = vector.load %arg5[%c0_16, %c0_17, %c0_18, %c0_19] : memref<1x4x2x128xf32, #tpu.memory_space<vmem>>, vector<1x4x2x128xf32>
    %26 = vector.shape_cast %25 : vector<1x4x2x128xf32> to vector<4x2x128xf32>
    %27 = arith.addf %26, %18 : vector<4x2x128xf32>
    %c0_20 = arith.constant 0 : index
    %c0_21 = arith.constant 0 : index
    %c0_22 = arith.constant 0 : index
    %c0_23 = arith.constant 0 : index
    %28 = vector.load %arg5[%c0_20, %c0_21, %c0_22, %c0_23] : memref<1x4x2x128xf32, #tpu.memory_space<vmem>>, vector<1x4x2x128xf32>
    %29 = vector.shape_cast %28 : vector<1x4x2x128xf32> to vector<4x2x128xf32>
    %30 = vector.shape_cast %27 : vector<4x2x128xf32> to vector<1x4x2x128xf32>
    tpu.vector_store %arg5[%c0_20, %c0_21, %c0_22, %c0_23], %30 {strides = array<i32>} : memref<1x4x2x128xf32, #tpu.memory_space<vmem>>, vector<1x4x2x128xf32>,
    return
  }
  func.func @transform_0(%arg0: i32, %arg1: i32) -> (i32, i32, i32, i32) {
    %c0_i32 = arith.constant 0 : i32
    %c0_i32_0 = arith.constant 0 : i32
    %c0_i32_1 = arith.constant 0 : i32
    return %arg0, %c0_i32, %arg1, %c0_i32_0 : i32, i32, i32, i32
  }
  func.func @transform_1(%arg0: i32, %arg1: i32) -> (i32, i32, i32, i32) {
    %c0_i32 = arith.constant 0 : i32
    %c0_i32_0 = arith.constant 0 : i32
    %c0_i32_1 = arith.constant 0 : i32
    return %arg0, %c0_i32, %arg1, %c0_i32_0 : i32, i32, i32, i32
  }
  func.func @transform_2(%arg0: i32, %arg1: i32) -> (i32, i32, i32, i32) {
    %c0_i32 = arith.constant 0 : i32
    %c0_i32_0 = arith.constant 0 : i32
    %c0_i32_1 = arith.constant 0 : i32
    %c0_i32_2 = arith.constant 0 : i32
    return %arg0, %c0_i32, %c0_i32_0, %c0_i32_1 : i32, i32, i32, i32
  }
  func.func @transform_3(%arg0: i32, %arg1: i32) -> (i32, i32, i32, i32) {
    %c0_i32 = arith.constant 0 : i32
    %c0_i32_0 = arith.constant 0 : i32
    %c0_i32_1 = arith.constant 0 : i32
    %c0_i32_2 = arith.constant 0 : i32
    return %arg0, %c0_i32, %c0_i32_0, %c0_i32_1 : i32, i32, i32, i32
  }
}

</mosaic_0001>

<llo_original>
// kernel: tpu_custom_call.1
$region0: #{tpu_custom_call.1}
  #allocation0 [shape = 'u32[]', space=smem, size = 0x4, offset = 0x4, fixed_abs, tag = 'smem constant byte address 0x4 - core index']
  #allocation1 [shape = 'u32[144,128]{1,0:T(1,128)}', space=vmem, size = 0x12000, scoped, tag = 'internal scratch']
  %s0 = inlined_call_operand.hbm [shape: f32[2,4,2,128], index: 0, kind: input, shape index: {}]
  %s1 = inlined_call_operand.hbm [shape: f32[2,4,2,128], index: 1, kind: input, shape index: {}]
  %s2 = inlined_call_operand.hbm [shape: f32[2,4,2,128], index: 2, kind: output, shape index: {0}]
  %s3 = inlined_call_operand.hbm [shape: f32[2,4,2,128], index: 3, kind: output, shape index: {1}]
  %4 = xla_tuple %s2, %s3
  %s5 = sld [smem:[#allocation0]]
  $region61: #{tpu_custom_call.1} parent=0
    _
  %s7 = ssub.s32 1, %s5
  %s8 = scalar_select 0, %s7, %s5
  $region1: #{tpu_custom_call.1} parent=0
    #allocation2 [shape = 'u8[8192]{0}', space=vmem, size = 0x2000, scoped, tag = 'input window, operand 0']
    #allocation3 [shape = 's32[2]{0}', space=sflag, size = 0x8, scoped, tag = 'scoped memory for tpu_custom_call.1']
    #allocation4 [shape = 's32[2]{0}', space=sflag, size = 0x8, scoped, tag = 'scoped memory for tpu_custom_call.1']
    #allocation5 [shape = 'u8[8192]{0}', space=vmem, size = 0x2000, scoped, tag = 'input window, operand 1']
    #allocation6 [shape = 's32[2]{0}', space=sflag, size = 0x8, scoped, tag = 'scoped memory for tpu_custom_call.1']
    #allocation7 [shape = 'u8[8192]{0}', space=vmem, size = 0x2000, scoped, tag = 'output window, operand 0']
    #allocation8 [shape = 'u8[8192]{0}', space=vmem, size = 0x2000, scoped, tag = 'output window, operand 1']
    #allocation9 [shape = 's32[2]{0}', space=sflag, size = 0x8, scoped, tag = 'scoped memory for tpu_custom_call.1']
    %9 = vsyncpa [#allocation3], 0
    %s10 = scalar_lea.sflag [#allocation3], 1
    %11 = vsyncpa %s10, 0
    %12 = vsyncpa [#allocation6], 0
    %s13 = scalar_lea.sflag [#allocation6], 1
    %14 = vsyncpa %s13, 0
    %15 = vsyncpa [#allocation4], 0
    %s16 = scalar_lea.sflag [#allocation4], 1
    %17 = vsyncpa %s16, 0
    %18 = vsyncpa [#allocation9], 0
    %s19 = scalar_lea.sflag [#allocation9], 1
    %20 = vsyncpa %s19, 0
    loop: start=0, step=1, limit=4
    $region2: #{tpu_custom_call.1} parent=1 // loop_pre_header
      _
    $region3: #{tpu_custom_call.1} parent=1 // loop_header
      %s22 = sphi 0, %s26
      %p23 = scmp.ge.s32.totalorder %s22, 4
      %s29 = sphi 0, %s41
      %s30 = sphi 0, %s37
      %s31 = sphi 0, %s29
      %s32 = sphi 0, %s30
      %s33 = sphi 0, %s31
      %s34 = sphi 0, %s32
      %s46 = sphi 0, %s48
      %s49 = sphi 0, %s46
      %s50 = sphi 0, %s49
      %s66 = sphi 0, %s50
      %s74 = sphi 0, %s76
      %s77 = sphi 0, %s74
      %s78 = sphi 0, %s77
      %s94 = sphi 0, %s78
      %s100 = sphi 0, %s102
      %s103 = sphi 0, %s100
      %s104 = sphi 0, %s103
      %s120 = sphi 0, %s104
      %s126 = sphi 0, %s128
      %s129 = sphi 0, %s126
      %s130 = sphi 0, %s129
      %s146 = sphi 0, %s130
    $region4: #{tpu_custom_call.1} parent=1 // loop_header_branch
      %25 = sbr.rel (%p23) target = $region8
    $region5: #{tpu_custom_call.1} parent=1 // loop_body
      %s27 = ssub.s32 %s22, 1
      %s28 = ssub.s32 %s22, 2
      %s35 = sadd.s32 1, %s30
      %p36 = scmp.ge.s32.totalorder %s35, 1
      %s37 = scalar_select %p36, 0, %s35
      %s38 = sadd.s32 1, %s29
      %s39 = scalar_select %p36, %s38, %s29
      %p40 = scmp.ge.s32.totalorder %s39, 2
      %s41 = scalar_select %p40, 0, %s39
      %s42 = ssub.s32 %s29, %s41
      %s43 = ssub.s32 %s30, %s37
      %s44 = sor.u32 %s42, %s43
      %p45 = scmp.eq.s32.totalorder %s44, 0
      %s47 = sadd.s32 %s46, 1
      %s48 = scalar_select %p45, %s46, %s47
      %p51 = pneg %p45
      %p52 = scmp.eq.s32.totalorder %s22, 1
      %p53 = por %p51, %p52
      %p54 = scmp.ne.s32.totalorder %s46, %s49
      %p55 = scmp.eq.s32.totalorder %s22, 0
      %p56 = por %p54, %p55
      %p57 = scmp.ne.s32.totalorder %s46, %s49
      %p58 = scmp.eq.s32.totalorder %s27, 1
      %p59 = por %p57, %p58
      %p60 = scmp.ne.s32.totalorder %s49, %s50
      %p61 = scmp.eq.s32.totalorder %s27, 0
      %p62 = por %p60, %p61
      %p63 = scmp.ne.s32.totalorder %s49, %s50
      %p64 = scmp.eq.s32.totalorder %s28, 1
      %p65 = por %p63, %p64
      %p67 = scmp.ne.s32.totalorder %s50, %s66
      %p68 = scmp.eq.s32.totalorder %s28, 0
      %p69 = por %p67, %p68
      %s70 = ssub.s32 %s29, %s41
      %s71 = ssub.s32 %s30, %s37
      %s72 = sor.u32 %s70, %s71
      %p73 = scmp.eq.s32.totalorder %s72, 0
      %s75 = sadd.s32 %s74, 1
      %s76 = scalar_select %p73, %s74, %s75
      %p79 = pneg %p73
      %p80 = scmp.eq.s32.totalorder %s22, 1
      %p81 = por %p79, %p80
      %p82 = scmp.ne.s32.totalorder %s74, %s77
      %p83 = scmp.eq.s32.totalorder %s22, 0
      %p84 = por %p82, %p83
      %p85 = scmp.ne.s32.totalorder %s74, %s77
      %p86 = scmp.eq.s32.totalorder %s27, 1
      %p87 = por %p85, %p86
      %p88 = scmp.ne.s32.totalorder %s77, %s78
      %p89 = scmp.eq.s32.totalorder %s27, 0
      %p90 = por %p88, %p89
      %p91 = scmp.ne.s32.totalorder %s77, %s78
      %p92 = scmp.eq.s32.totalorder %s28, 1
      %p93 = por %p91, %p92
      %p95 = scmp.ne.s32.totalorder %s78, %s94
      %p96 = scmp.eq.s32.totalorder %s28, 0
      %p97 = por %p95, %p96
      %s98 = ssub.s32 %s29, %s41
      %p99 = scmp.eq.s32.totalorder %s98, 0
      %s101 = sadd.s32 %s100, 1
      %s102 = scalar_select %p99, %s100, %s101
      %p105 = pneg %p99
      %p106 = scmp.eq.s32.totalorder %s22, 1
      %p107 = por %p105, %p106
      %p108 = scmp.ne.s32.totalorder %s100, %s103
      %p109 = scmp.eq.s32.totalorder %s22, 0
      %p110 = por %p108, %p109
      %p111 = scmp.ne.s32.totalorder %s100, %s103
      %p112 = scmp.eq.s32.totalorder %s27, 1
      %p113 = por %p111, %p112
      %p114 = scmp.ne.s32.totalorder %s103, %s104
      %p115 = scmp.eq.s32.totalorder %s27, 0
      %p116 = por %p114, %p115
      %p117 = scmp.ne.s32.totalorder %s103, %s104
      %p118 = scmp.eq.s32.totalorder %s28, 1
      %p119 = por %p117, %p118
      %p121 = scmp.ne.s32.totalorder %s104, %s120
      %p122 = scmp.eq.s32.totalorder %s28, 0
      %p123 = por %p121, %p122
      %s124 = ssub.s32 %s29, %s41
      %p125 = scmp.eq.s32.totalorder %s124, 0
      %s127 = sadd.s32 %s126, 1
      %s128 = scalar_select %p125, %s126, %s127
      %p131 = pneg %p125
      %p132 = scmp.eq.s32.totalorder %s22, 1
      %p133 = por %p131, %p132
      %p134 = scmp.ne.s32.totalorder %s126, %s129
      %p135 = scmp.eq.s32.totalorder %s22, 0
      %p136 = por %p134, %p135
      %p137 = scmp.ne.s32.totalorder %s126, %s129
      %p138 = scmp.eq.s32.totalorder %s27, 1
      %p139 = por %p137, %p138
      %p140 = scmp.ne.s32.totalorder %s129, %s130
      %p141 = scmp.eq.s32.totalorder %s27, 0
      %p142 = por %p140, %p141
      %p143 = scmp.ne.s32.totalorder %s129, %s130
      %p144 = scmp.eq.s32.totalorder %s28, 1
      %p145 = por %p143, %p144
      %p147 = scmp.ne.s32.totalorder %s130, %s146
      %p148 = scmp.eq.s32.totalorder %s28, 0
      %p149 = por %p147, %p148
      %p150 = scmp.le.s32.totalorder 1, %s22
      %p151 = scmp.lt.s32.totalorder %s22, 3
      %p152 = pnand %p150, %p151
      %p153 = pneg %p152
      // Predicated region
      $region9: #{tpu_custom_call.1} parent=5 // pred_check
        _
      $region10: #{tpu_custom_call.1} parent=5 // pred_check_branch
        %155 = sbr.rel (%p152) target = $region12
      $region11: #{tpu_custom_call.1} parent=5 // pred_region
        %s156 = ssub.s32 %s22, 1
      $region12: #{tpu_custom_call.1} parent=5 // pred_fallthru
        _
      %p157 = scmp.lt.s32.totalorder %s22, 2
      // Predicated region
      $region13: #{tpu_custom_call.1} parent=5 // pred_check
        %p158 = pneg %p157
      $region14: #{tpu_custom_call.1} parent=5 // pred_check_branch
        %160 = sbr.rel (%p158) target = $region16
      $region15: #{tpu_custom_call.1} parent=5 // pred_region
        // Predicated region
        $region17: #{tpu_custom_call.1} parent=15 // pred_check
          %p161 = pneg %p56
        $region18: #{tpu_custom_call.1} parent=15 // pred_check_branch
          %163 = sbr.rel (%p161) target = $region20
        $region19: #{tpu_custom_call.1} parent=15 // pred_region
          %s164 = sand.u32 %s46, 1
          %s165 = scalar_lea.sflag [#allocation3], %s164
          %s166 = sand.u32 %s46, 1
          %s167 = smul.addr %s166, 8
          %s168 = scalar_lea.vmem [#allocation2], %s167
          %s170 = ssub.s32 128, 128
          %171 = vsyncadd %s165, %s170
          %s172 = smul.addr %s29, 4
          %s173 = sadd.s32 %s30, %s172
          %s174 = smul.addr %s173, 32
          %s175 = scalar_lea.hbm %s0, %s174
          %s176 = sshll.u32 %s168, 4
          %s177 = int_to_ptr.vmem [resolvable:$true] %s176
          %182 = dma.hbm_to_vmem [thread:$0]  %s175, 128, %s177, %s165, 32, 32, 2
        $region20: #{tpu_custom_call.1} parent=15 // pred_fallthru
          _
        // Predicated region
        $region21: #{tpu_custom_call.1} parent=15 // pred_check
          %p183 = pneg %p84
        $region22: #{tpu_custom_call.1} parent=15 // pred_check_branch
          %185 = sbr.rel (%p183) target = $region24
        $region23: #{tpu_custom_call.1} parent=15 // pred_region
          %s186 = sand.u32 %s74, 1
          %s187 = scalar_lea.sflag [#allocation6], %s186
          %s188 = sand.u32 %s74, 1
          %s189 = smul.addr %s188, 8
          %s190 = scalar_lea.vmem [#allocation5], %s189
          %s192 = ssub.s32 128, 128
          %193 = vsyncadd %s187, %s192
          %s194 = smul.addr %s29, 4
          %s195 = sadd.s32 %s30, %s194
          %s196 = smul.addr %s195, 32
          %s197 = scalar_lea.hbm %s1, %s196
          %s198 = sshll.u32 %s190, 4
          %s199 = int_to_ptr.vmem [resolvable:$true] %s198
          %204 = dma.hbm_to_vmem [thread:$0]  %s197, 128, %s199, %s187, 32, 32, 2
        $region24: #{tpu_custom_call.1} parent=15 // pred_fallthru
          _
      $region16: #{tpu_custom_call.1} parent=5 // pred_fallthru
        _
      %p205 = scmp.le.s32.totalorder 1, %s22
      %p206 = scmp.lt.s32.totalorder %s22, 3
      %p207 = pnand %p205, %p206
      %p208 = pneg %p207
      // Predicated region
      $region25: #{tpu_custom_call.1} parent=5 // pred_check
        _
      $region26: #{tpu_custom_call.1} parent=5 // pred_check_branch
        %210 = sbr.rel (%p207) target = $region28
      $region27: #{tpu_custom_call.1} parent=5 // pred_region
        %s211 = ssub.s32 %s22, 1
        %s212 = sand.u32 %s49, 1
        %s213 = scalar_lea.sflag [#allocation3], %s212
        %s214 = sand.u32 %s49, 1
        %s215 = smul.addr %s214, 8
        %s216 = scalar_lea.vmem [#allocation2], %s215
        // Predicated region
        $region29: #{tpu_custom_call.1} parent=27 // pred_check
          %p217 = pneg %p62
        $region30: #{tpu_custom_call.1} parent=27 // pred_check_branch
          %219 = sbr.rel (%p217) target = $region32
        $region31: #{tpu_custom_call.1} parent=27 // pred_region
          %220 = dma.done %s213, 128
        $region32: #{tpu_custom_call.1} parent=27 // pred_fallthru
          _
        %s221 = sand.u32 %s77, 1
        %s222 = scalar_lea.sflag [#allocation6], %s221
        %s223 = sand.u32 %s77, 1
        %s224 = smul.addr %s223, 8
        %s225 = scalar_lea.vmem [#allocation5], %s224
        // Predicated region
        $region33: #{tpu_custom_call.1} parent=27 // pred_check
          %p226 = pneg %p90
        $region34: #{tpu_custom_call.1} parent=27 // pred_check_branch
          %228 = sbr.rel (%p226) target = $region36
        $region35: #{tpu_custom_call.1} parent=27 // pred_region
          %229 = dma.done %s222, 128
        $region36: #{tpu_custom_call.1} parent=27 // pred_fallthru
          _
        %s230 = sand.u32 %s49, 1
        %s231 = scalar_lea.sflag [#allocation3], %s230
        %s232 = sand.u32 %s49, 1
        %s233 = smul.addr %s232, 8
        %s234 = scalar_lea.vmem [#allocation2], %s233
        %p235 = pneg %p62
        %p236 = pneg %p59
        %s237 = sand.u32 %s77, 1
        %s238 = scalar_lea.sflag [#allocation6], %s237
        %s239 = sand.u32 %s77, 1
        %s240 = smul.addr %s239, 8
        %s241 = scalar_lea.vmem [#allocation5], %s240
        %p242 = pneg %p90
        %p243 = pneg %p87
        %p244 = pneg %p116
        %p245 = pneg %p113
        %s246 = sand.u32 %s103, 1
        %s247 = scalar_lea.sflag [#allocation4], %s246
        %s248 = sand.u32 %s103, 1
        %s249 = smul.addr %s248, 8
        %s250 = scalar_lea.vmem [#allocation7], %s249
        %p251 = pneg %p142
        %p252 = pneg %p139
        %s253 = sand.u32 %s129, 1
        %s254 = scalar_lea.sflag [#allocation9], %s253
        %s255 = sand.u32 %s129, 1
        %s256 = smul.addr %s255, 8
        %s257 = scalar_lea.vmem [#allocation8], %s256
        %p258 = scmp.eq.s32.totalorder %s32, 0
        // Predicated region
        $region37: #{tpu_custom_call.1} parent=27 // pred_check
          %p259 = pneg %p258
        $region38: #{tpu_custom_call.1} parent=27 // pred_check_branch
          %261 = sbr.rel (%p259) target = $region40
        $region39: #{tpu_custom_call.1} parent=27 // pred_region
          %262 = vst [vmem:[%s250] sm:$0x3] 0.0
          %263 = vst [vmem:[%s250 + $0x2] sm:$0x3] 0.0
          %264 = vst [vmem:[%s250 + $0x4] sm:$0x3] 0.0
          %265 = vst [vmem:[%s250 + $0x6] sm:$0x3] 0.0
          %266 = vst [vmem:[%s257] sm:$0x3] 0.0
          %267 = vst [vmem:[%s257 + $0x2] sm:$0x3] 0.0
          %268 = vst [vmem:[%s257 + $0x4] sm:$0x3] 0.0
          %269 = vst [vmem:[%s257 + $0x6] sm:$0x3] 0.0
        $region40: #{tpu_custom_call.1} parent=27 // pred_fallthru
          _
        %v270 = vld [vmem:[%s216] sm:$0x3]
        %v271 = vld [vmem:[%s216 + $0x2] sm:$0x3]
        %v272 = vld [vmem:[%s216 + $0x4] sm:$0x3]
        %v273 = vld [vmem:[%s216 + $0x6] sm:$0x3]
        %v274 = vld [vmem:[%s225] sm:$0x3]
        %v275 = vld [vmem:[%s225 + $0x2] sm:$0x3]
        %v276 = vld [vmem:[%s225 + $0x4] sm:$0x3]
        %v277 = vld [vmem:[%s225 + $0x6] sm:$0x3]
        %v278 = vmul.f32 %v270, %v274
        %v279 = vmul.f32 %v271, %v275
        %v280 = vmul.f32 %v272, %v276
        %v281 = vmul.f32 %v273, %v277
        %v282 = vadd.f32 %v278, 0.0
        %v283 = vadd.f32 %v279, 0.0
        %v284 = vadd.f32 %v280, 0.0
        %v285 = vadd.f32 %v281, 0.0
        %v286 = vmul.f32 %v270, %v270
        %v287 = vmul.f32 %v271, %v271
        %v288 = vmul.f32 %v272, %v272
        %v289 = vmul.f32 %v273, %v273
        %v290 = vadd.f32 %v286, 0.0
        %v291 = vadd.f32 %v287, 0.0
        %v292 = vadd.f32 %v288, 0.0
        %v293 = vadd.f32 %v289, 0.0
        %v294 = vmul.f32 %v274, %v274
        %v295 = vmul.f32 %v275, %v275
        %v296 = vmul.f32 %v276, %v276
        %v297 = vmul.f32 %v277, %v277
        %v298 = vadd.f32 %v290, %v294
        %v299 = vadd.f32 %v291, %v295
        %v300 = vadd.f32 %v292, %v296
        %v301 = vadd.f32 %v293, %v297
        %v302 = vld [vmem:[%s250] sm:$0x3]
        %v303 = vld [vmem:[%s250 + $0x2] sm:$0x3]
        %v304 = vld [vmem:[%s250 + $0x4] sm:$0x3]
        %v305 = vld [vmem:[%s250 + $0x6] sm:$0x3]
        %v306 = vadd.f32 %v302, %v282
        %v307 = vadd.f32 %v303, %v283
        %v308 = vadd.f32 %v304, %v284
        %v309 = vadd.f32 %v305, %v285
        %310 = vst [vmem:[%s250] sm:$0x3] %v306
        %311 = vst [vmem:[%s250 + $0x2] sm:$0x3] %v307
        %312 = vst [vmem:[%s250 + $0x4] sm:$0x3] %v308
        %313 = vst [vmem:[%s250 + $0x6] sm:$0x3] %v309
        %v314 = vld [vmem:[%s257] sm:$0x3]
        %v315 = vld [vmem:[%s257 + $0x2] sm:$0x3]
        %v316 = vld [vmem:[%s257 + $0x4] sm:$0x3]
        %v317 = vld [vmem:[%s257 + $0x6] sm:$0x3]
        %v318 = vadd.f32 %v314, %v298
        %v319 = vadd.f32 %v315, %v299
        %v320 = vadd.f32 %v316, %v300
        %v321 = vadd.f32 %v317, %v301
        %322 = vst [vmem:[%s257] sm:$0x3] %v318
        %323 = vst [vmem:[%s257 + $0x2] sm:$0x3] %v319
        %324 = vst [vmem:[%s257 + $0x4] sm:$0x3] %v320
        %325 = vst [vmem:[%s257 + $0x6] sm:$0x3] %v321
        %s326 = sand.u32 %s103, 1
        %s327 = scalar_lea.sflag [#allocation4], %s326
        %s328 = sand.u32 %s103, 1
        %s329 = smul.addr %s328, 8
        %s330 = scalar_lea.vmem [#allocation7], %s329
        %s331 = sand.u32 %s129, 1
        %s332 = scalar_lea.sflag [#allocation9], %s331
        %s333 = sand.u32 %s129, 1
        %s334 = smul.addr %s333, 8
        %s335 = scalar_lea.vmem [#allocation8], %s334
        // Predicated region
        $region41: #{tpu_custom_call.1} parent=27 // pred_check
          %p336 = pneg %p113
        $region42: #{tpu_custom_call.1} parent=27 // pred_check_branch
          %338 = sbr.rel (%p336) target = $region44
        $region43: #{tpu_custom_call.1} parent=27 // pred_region
          %s340 = ssub.s32 128, 128
          %341 = vsyncadd %s327, %s340
          %s342 = smul.addr %s31, 4
          %s343 = smul.addr %s342, 32
          %s344 = scalar_lea.hbm %s2, %s343
          %s345 = sshll.u32 %s330, 4
          %s346 = int_to_ptr.vmem [resolvable:$true] %s345
          %351 = dma.vmem_to_hbm [thread:$0]  %s346, 128, %s344, %s327, 32, 32, 2
        $region44: #{tpu_custom_call.1} parent=27 // pred_fallthru
          _
        // Predicated region
        $region45: #{tpu_custom_call.1} parent=27 // pred_check
          %p352 = pneg %p139
        $region46: #{tpu_custom_call.1} parent=27 // pred_check_branch
          %354 = sbr.rel (%p352) target = $region48
        $region47: #{tpu_custom_call.1} parent=27 // pred_region
          %s356 = ssub.s32 128, 128
          %357 = vsyncadd %s332, %s356
          %s358 = smul.addr %s31, 4
          %s359 = smul.addr %s358, 32
          %s360 = scalar_lea.hbm %s3, %s359
          %s361 = sshll.u32 %s335, 4
          %s362 = int_to_ptr.vmem [resolvable:$true] %s361
          %367 = dma.vmem_to_hbm [thread:$0]  %s362, 128, %s360, %s332, 32, 32, 2
        $region48: #{tpu_custom_call.1} parent=27 // pred_fallthru
          _
      $region28: #{tpu_custom_call.1} parent=5 // pred_fallthru
        _
      %p368 = scmp.le.s32.totalorder 2, %s22
      // Predicated region
      $region49: #{tpu_custom_call.1} parent=5 // pred_check
        %p369 = pneg %p368
      $region50: #{tpu_custom_call.1} parent=5 // pred_check_branch
        %371 = sbr.rel (%p369) target = $region52
      $region51: #{tpu_custom_call.1} parent=5 // pred_region
        %s372 = ssub.s32 %s22, 2
        // Predicated region
        $region53: #{tpu_custom_call.1} parent=51 // pred_check
          %p373 = pneg %p119
        $region54: #{tpu_custom_call.1} parent=51 // pred_check_branch
          %375 = sbr.rel (%p373) target = $region56
        $region55: #{tpu_custom_call.1} parent=51 // pred_region
          %s376 = sand.u32 %s104, 1
          %s377 = scalar_lea.sflag [#allocation4], %s376
          %s378 = sand.u32 %s104, 1
          %s379 = smul.addr %s378, 8
          %s380 = scalar_lea.vmem [#allocation7], %s379
          %381 = dma.done %s377, 128
        $region56: #{tpu_custom_call.1} parent=51 // pred_fallthru
          _
        // Predicated region
        $region57: #{tpu_custom_call.1} parent=51 // pred_check
          %p382 = pneg %p145
        $region58: #{tpu_custom_call.1} parent=51 // pred_check_branch
          %384 = sbr.rel (%p382) target = $region60
        $region59: #{tpu_custom_call.1} parent=51 // pred_region
          %s385 = sand.u32 %s130, 1
          %s386 = scalar_lea.sflag [#allocation9], %s385
          %s387 = sand.u32 %s130, 1
          %s388 = smul.addr %s387, 8
          %s389 = scalar_lea.vmem [#allocation8], %s388
          %390 = dma.done %s386, 128
        $region60: #{tpu_custom_call.1} parent=51 // pred_fallthru
          _
      $region52: #{tpu_custom_call.1} parent=5 // pred_fallthru
        _
    $region6: #{tpu_custom_call.1} parent=1 // loop_footer
      %s26 = sadd.s32 1, %s22
    $region7: #{tpu_custom_call.1} parent=1 // loop_footer_branch
      %21 = sbr.rel target = $region3
    $region8: #{tpu_custom_call.1} parent=1 // loop_exit
      _
    %391 = vsyncpa [#allocation3], 1
    %s392 = scalar_lea.sflag [#allocation3], 1
    %393 = vsyncpa %s392, 1
    %394 = vsyncpa [#allocation6], 1
    %s395 = scalar_lea.sflag [#allocation6], 1
    %396 = vsyncpa %s395, 1
    %397 = vsyncpa [#allocation4], 1
    %s398 = scalar_lea.sflag [#allocation4], 1
    %399 = vsyncpa %s398, 1
    %400 = vsyncpa [#allocation9], 1
    %s401 = scalar_lea.sflag [#allocation9], 1
    %402 = vsyncpa %s401, 1

</llo_original>
